<compile_context>
chip_gen: v7x
topology: tpu7x:2x2x1
jax: 0.10.0
libtpu: 0.0.40
codegen_flags: <defaults>
</compile_context>

<pallas_src>
import functools
import math

import jax
import jax.numpy as jnp
from jax import lax
from jax.experimental import pallas as pl
from jax.experimental.pallas import tpu as pltpu

AFFINE = False
BASE_WIDTH = [8, 12, 16, 20]
MAX_WIDTH = 32
OVERLAP = 1.0
BN_EPS = 1e-5

KH = KW = 3
STRIDE = 2
PAD = 1
K_REAL = 3 * KH * KW          # 27 real contraction entries (cin, kh, kw)
K_ONES = K_REAL               # row 27 carries ones -> per-k column sums via G
KP = 32                       # contraction dim padded to 32 (sublane aligned)
LANE = 128

CONV_LANE_CAP = 32 * 1024     # conv/BN lane tile cap: ~12 MiB resident (x2 buf)
GRAM_LANE_CAP = 64 * 1024     # Gram lane tile cap:    ~ 8 MiB resident (x2 buf)
VMEM_LIMIT = 32 * 1024 * 1024


def _round_up(a, b):
    return (a + b - 1) // b * b


def _choose_lane_tiling(r, cap):
    """Largest lane tile (multiple of 128, <= cap) with a minimal grid and
    <128 lanes of padding per grid step."""
    r128 = _round_up(r, LANE)
    if r128 <= cap:
        return r128, 1
    n = -(-r128 // cap)
    while True:
        tile = _round_up(-(-r128 // n), LANE)
        if tile <= cap:
            return tile, n
        n += 1


def _gram_lane_tiling(tr_conv, n_conv, cap):
    """Gram tile = conv tile * k, with k the largest divisor of the conv grid
    such that tile*k <= cap, so both passes share one padded patch width."""
    for k in range(n_conv, 0, -1):
        if n_conv % k == 0 and tr_conv * k <= cap:
            return tr_conv * k, n_conv // k
    return tr_conv, n_conv


# ---------------------------------------------------------------------------
# Pallas kernel 1: per-tile partial 32x32 patch Gram matrices (summed outside).
# ---------------------------------------------------------------------------
def _gram_kernel(p_ref, g_ref):
    p = p_ref[...]                                    # (KP, TR) bf16
    g_ref[...] = lax.dot_general(                     # contract over lanes (R)
        p, p, dimension_numbers=(((1,), (1,)), ((), ())),
        preferred_element_type=jnp.float32)


def patch_gram(patches_t, tr, n_tiles):
    kp, r_total = patches_t.shape
    partials = pl.pallas_call(
        _gram_kernel,
        out_shape=jax.ShapeDtypeStruct((n_tiles, kp, kp), jnp.float32),
        grid_spec=pltpu.PrefetchScalarGridSpec(
            num_scalar_prefetch=0,
            grid=(n_tiles,),
            in_specs=[pl.BlockSpec((kp, tr), lambda i: (0, i))],
            out_specs=pl.BlockSpec((None, kp, kp), lambda i: (i, 0, 0)),
        ),
        compiler_params=pltpu.CompilerParams(
            dimension_semantics=("parallel",),         # megacore-shardable (v7x)
            vmem_limit_bytes=VMEM_LIMIT,
        ),
        cost_estimate=pl.CostEstimate(
            flops=2 * kp * kp * r_total,
            transcendentals=0,
            bytes_accessed=kp * r_total * 2 + n_tiles * kp * kp * 4,
        ),
    )(patches_t)
    return jnp.sum(partials, axis=0)                   # (KP, KP) f32, tiny


# ---------------------------------------------------------------------------
# Pallas kernel 2: fused conv-matmul + (folded) BatchNorm + ReLU6, bf16 out.
# ---------------------------------------------------------------------------
def _conv_bn_relu6_kernel(w_ref, shift_ref, p_ref, o_ref):
    # w: (C_pad, KP) bf16 with BN scale pre-folded; p: (KP, TR) bf16;
    # shift: (C_pad, 1) f32 = -mean*scale (lane-broadcast).
    y = jnp.dot(w_ref[...], p_ref[...], preferred_element_type=jnp.float32)
    y = y + shift_ref[...]
    o_ref[...] = jnp.clip(y, 0.0, 6.0).astype(o_ref.dtype)   # ReLU6 -> bf16


def conv_bn_relu6(w_scaled, shift, patches_t, tr, n_tiles):
    c_pad, kp = w_scaled.shape
    _, r_total = patches_t.shape
    return pl.pallas_call(
        _conv_bn_relu6_kernel,
        out_shape=jax.ShapeDtypeStruct((c_pad, r_total), jnp.bfloat16),
        grid_spec=pltpu.PrefetchScalarGridSpec(
            num_scalar_prefetch=0,
            grid=(n_tiles,),
            in_specs=[
                pl.BlockSpec((c_pad, kp), lambda r: (0, 0)),
                pl.BlockSpec((c_pad, 1), lambda r: (0, 0)),
                pl.BlockSpec((kp, tr), lambda r: (0, r)),
            ],
            out_specs=pl.BlockSpec((c_pad, tr), lambda r: (0, r)),
        ),
        compiler_params=pltpu.CompilerParams(
            dimension_semantics=("parallel",),         # independent R tiles
            vmem_limit_bytes=VMEM_LIMIT,
        ),
        cost_estimate=pl.CostEstimate(
            flops=2 * c_pad * kp * r_total,
            transcendentals=0,
            bytes_accessed=(kp * r_total * 2 + c_pad * r_total * 2
                            + c_pad * kp * 2 + c_pad * 4),
        ),
    )(w_scaled, shift, patches_t)


# ---------------------------------------------------------------------------
# Wrapper-side glue: patch extraction, weight projection, parameter init.
# ---------------------------------------------------------------------------
def extract_patches_t(x):
    """NCHW -> (32, R_total) bf16 patch matrix, K on sublanes, R on lanes.

    Rows 0..26: patch values ordered (cin, kh, kw) (matches PyTorch OIHW
    flattening).  Row 27: ones (so the Gram matrix also yields column sums).
    Rows 28..31: zero.  Columns ordered (n, ho, wo); the padded tail columns
    (beyond the real R) are all-zero, including the ones-row, so they add
    nothing to the Gram and the stats divide by the real R.
    """
    n, _, h, w = x.shape
    ho = (h + 2 * PAD - KH) // STRIDE + 1
    wo = (w + 2 * PAD - KW) // STRIDE + 1
    r = n * ho * wo

    tr_conv, n_conv = _choose_lane_tiling(r, CONV_LANE_CAP)
    r_total = tr_conv * n_conv

    # Keep the whole wrapper-side im2col in bf16 (halves the materialized
    # (N,27,Ho,Wo) HBM stream).  TODO(synk): fuse the im2col into the kernel.
    p = lax.conv_general_dilated_patches(
        x.astype(jnp.bfloat16), filter_shape=(KH, KW),
        window_strides=(STRIDE, STRIDE), padding=((PAD, PAD), (PAD, PAD)),
        dimension_numbers=("NCHW", "OIHW", "NCHW"))    # (N, 27, Ho, Wo) bf16
    p = p.transpose(1, 0, 2, 3).reshape(K_REAL, r)     # (27, R)

    ones = jnp.ones((1, r), jnp.bfloat16)
    zeros = jnp.zeros((KP - K_REAL - 1, r), jnp.bfloat16)
    pk = jnp.concatenate([p, ones, zeros], axis=0)     # (32, R)
    if r_total != r:
        pk = jnp.pad(pk, ((0, 0), (0, r_total - r)))
    return pk, (n, ho, wo, r, tr_conv, n_conv)


def project_weight(meta, P, Q):
    # TODO(synk): `project` is not defined in the provided source; using the
    # standard bilinear channel projection used by TProjection-style modules:
    # out[x, y, h, w] = sum_{i, j} P[i, x] * meta[i, j, h, w] * Q[j, y]
    return jnp.einsum("ijhw,ix,jy->xyhw", meta, P, Q)


def build_fused_weight(meta, Ps, Qs, arch):
    """Concatenate every selected candidate's projected weight along C."""
    ws, widths = [], []
    for cand_idx in arch:
        w = project_weight(meta, Ps[cand_idx], Qs[cand_idx])   # (cand, 3, 3, 3)
        ws.append(w.reshape(w.shape[0], -1))                   # (cand, 27)
        widths.append(w.shape[0])
    w_cat = jnp.concatenate(ws, axis=0)                        # (C_total, 27)
    c_total = w_cat.shape[0]
    c_pad = _round_up(max(c_total, 16), 16)
    w_pad = jnp.zeros((c_pad, KP), jnp.float32).at[:c_total, :K_REAL].set(w_cat)
    return w_pad, widths, c_pad


def init_params(key):
    """Deterministic re-implementation of FirstBlock.__init__ parameter init."""
    k_meta, k_p = jax.random.split(key)
    # conv0_kernel: kaiming_uniform_(a=sqrt(5)) -> U(-1/sqrt(fan_in), 1/sqrt(fan_in))
    fan_in = 3 * 3 * 3
    bound = 1.0 / math.sqrt(fan_in)
    meta = jax.random.uniform(
        k_meta, (MAX_WIDTH, 3, 3, 3), jnp.float32, minval=-bound, maxval=bound)
    Ps, Qs = [], []
    pkeys = jax.random.split(k_p, len(BASE_WIDTH))
    for i, cand in enumerate(BASE_WIDTH):
        # TProjection._init_projection for P (cout=32, cout_p=cand), overlap=1.0:
        # identity block at the top + N(0, 0.01) noise.
        initP = jnp.zeros((MAX_WIDTH, cand), jnp.float32)
        initP = initP.at[:cand, :].set(jnp.eye(cand, dtype=jnp.float32))
        P = initP + 0.01 * jax.random.normal(pkeys[i], (MAX_WIDTH, cand), jnp.float32)
        Q = jnp.eye(3, dtype=jnp.float32)   # meta_c == curr_c == 3 -> identity
        Ps.append(P)
        Qs.append(Q)
    return meta, Ps, Qs


@functools.partial(jax.jit, static_argnums=(1,))
def first_block_forward(x, arch, meta, Ps, Qs):
    """FirstBlock.forward: per arch index, projected 3x3/s2 conv -> BN -> ReLU6."""
    if isinstance(arch, int):
        arch = (arch,)

    patches_t, (n, ho, wo, r, tr_conv, n_conv) = extract_patches_t(x)
    tr_gram, n_gram = _gram_lane_tiling(tr_conv, n_conv, GRAM_LANE_CAP)

    w_pad_f32, widths, c_pad = build_fused_weight(meta, Ps, Qs, arch)
    w_stats = w_pad_f32.astype(jnp.bfloat16).astype(jnp.float32)  # bf16-rounded

    # Pass 1: 32x32 patch Gram (ones-row -> column sums), summed over tiles.
    gram = patch_gram(patches_t, tr_gram, n_gram)

    # Per-channel training-mode BN statistics derived from the Gram matrix:
    #   sum_r y[c]   = (W G e_ones)[c]
    #   sum_r y[c]^2 = (W G W^T)[c, c]
    count = jnp.float32(r)
    mean = (w_stats @ gram[:, K_ONES]) / count                     # (C_pad,)
    e_y2 = jnp.einsum("ck,kl,cl->c", w_stats, gram, w_stats) / count
    var = jnp.maximum(e_y2 - mean * mean, 0.0)
    scale = lax.rsqrt(var + BN_EPS)

    # Fold the BN scale into the weights; the kernel only adds a shift.
    w_scaled = (w_pad_f32 * scale[:, None]).astype(jnp.bfloat16)   # (C_pad, KP)
    shift = (-mean * scale).reshape(c_pad, 1).astype(jnp.float32)  # (C_pad, 1)

    # Pass 2: conv matmul + shift + ReLU6, lane-dense (C_pad, R_total) bf16 out.
    out = conv_bn_relu6(w_scaled, shift, patches_t, tr_conv, n_conv)

    outputs, off = [], 0
    for cand in widths:
        y = out[off:off + cand, :r].reshape(cand, n, ho, wo)
        outputs.append(y.transpose(1, 0, 2, 3))        # back to NCHW (bf16)
        off += cand
    return outputs


# ---------------------------------------------------------------------------
# Pure-JAX reference (f32, HIGHEST precision) for a sanity check.
# ---------------------------------------------------------------------------
def _reference_one(x, w):
    y = lax.conv_general_dilated(
        x, w, window_strides=(STRIDE, STRIDE), padding=((PAD, PAD), (PAD, PAD)),
        dimension_numbers=("NCHW", "OIHW", "NCHW"),
        precision=lax.Precision.HIGHEST)
    mean = y.mean(axis=(0, 2, 3), keepdims=True)
    var = ((y - mean) ** 2).mean(axis=(0, 2, 3), keepdims=True)
    y = (y - mean) * lax.rsqrt(var + BN_EPS)
    return jnp.clip(y, 0.0, 6.0)


if __name__ == "__main__":
    key = jax.random.PRNGKey(0)
    k_params, k_x = jax.random.split(key)

    meta, Ps, Qs = init_params(k_params)

    # Small deterministic input: batch=2, cin=3 (RGB is fixed by the module), 16x16.
    x = jax.random.normal(k_x, (2, 3, 16, 16), dtype=jnp.float32)

    # arch: candidate indices (PyTorch: arch.int().tolist()); [0, 2] -> widths 8, 16.
    arch = (0, 2)

    outs = first_block_forward(x, arch, meta, Ps, Qs)
    outs = jax.block_until_ready(outs)

    # Sanity check vs the pure-f32 reference.  Error budget: bf16 patch/weight
    # streams (~1e-2) + BN scale folded into bf16 weights (~1e-2) + bf16 output
    # rounding (<=1.2e-2 on values <=6) -> tolerance 7e-2.
    for out, cand_idx in zip(outs, arch):
        w = project_weight(meta, Ps[cand_idx], Qs[cand_idx])
        ref = _reference_one(x, w)
        assert out.shape == (2, BASE_WIDTH[cand_idx], 8, 8), out.shape
        err = float(jnp.max(jnp.abs(out.astype(jnp.float32) - ref)))
        assert err < 7e-2, f"mismatch vs reference: max abs err = {err}"

    print("KERNEL_OK")
</pallas_src>

<mosaic_0001>
module attributes {stable_mosaic.version = 11 : i64} {
  func.func @_gram_kernel(%arg0: i32, %arg1: memref<32x128xbf16, #tpu.memory_space<vmem>>, %arg2: memref<1x32x32xf32, #tpu.memory_space<vmem>>) attributes {dimension_semantics = [#tpu.dimension_semantics<parallel>], iteration_bounds = array<i64: 1>, scalar_prefetch = 0 : i64, scratch_operands = 0 : i64, tpu.core_type = #tpu.core_type<tc>, window_params = [{transform_indices = @transform_0, window_bounds = array<i64: 32, 128>}, {transform_indices = @transform_1, window_bounds = array<i64: 1, 32, 32>}]} {
    %c0 = arith.constant 0 : index
    %c0_0 = arith.constant 0 : index
    %0 = vector.load %arg1[%c0, %c0_0] : memref<32x128xbf16, #tpu.memory_space<vmem>>, vector<32x128xbf16>
    %cst = arith.constant dense<0.000000e+00> : vector<32x32xf32>
    %1 = tpu.matmul %0, %0, %cst {dimension_numbers = #tpu.dot_dimension_numbers<[1], [1], [0], [0], [0, 0, 1, 0], [], []>} : vector<32x128xbf16>, vector<32x128xbf16>, vector<32x32xf32> -> vector<32x32xf32>
    %c0_1 = arith.constant 0 : index
    %c0_2 = arith.constant 0 : index
    %c0_3 = arith.constant 0 : index
    %2 = vector.load %arg2[%c0_1, %c0_2, %c0_3] : memref<1x32x32xf32, #tpu.memory_space<vmem>>, vector<1x32x32xf32>
    %3 = vector.shape_cast %2 : vector<1x32x32xf32> to vector<32x32xf32>
    %4 = vector.shape_cast %1 : vector<32x32xf32> to vector<1x32x32xf32>
    tpu.vector_store %arg2[%c0_1, %c0_2, %c0_3], %4 {strides = array<i32>} : memref<1x32x32xf32, #tpu.memory_space<vmem>>, vector<1x32x32xf32>,
    return
  }
  func.func @transform_0(%arg0: i32) -> (i32, i32) {
    %c0_i32 = arith.constant 0 : i32
    %c0_i32_0 = arith.constant 0 : i32
    return %c0_i32, %arg0 : i32, i32
  }
  func.func @transform_1(%arg0: i32) -> (i32, i32, i32) {
    %c0_i32 = arith.constant 0 : i32
    %c0_i32_0 = arith.constant 0 : i32
    %c0_i32_1 = arith.constant 0 : i32
    return %arg0, %c0_i32, %c0_i32_0 : i32, i32, i32
  }
}

module attributes {stable_mosaic.version = 11 : i64} {
  func.func @_conv_bn_relu6_kernel(%arg0: i32, %arg1: memref<32x32xbf16, #tpu.memory_space<vmem>>, %arg2: memref<32x1xf32, #tpu.memory_space<vmem>>, %arg3: memref<32x128xbf16, #tpu.memory_space<vmem>>, %arg4: memref<32x128xbf16, #tpu.memory_space<vmem>>) attributes {dimension_semantics = [#tpu.dimension_semantics<parallel>], iteration_bounds = array<i64: 1>, scalar_prefetch = 0 : i64, scratch_operands = 0 : i64, tpu.core_type = #tpu.core_type<tc>, window_params = [{pipeline_mode = #tpu.pipeline_mode<synchronous>, transform_indices = @transform_0, window_bounds = array<i64: 32, 32>}, {pipeline_mode = #tpu.pipeline_mode<synchronous>, transform_indices = @transform_1, window_bounds = array<i64: 32, 1>}, {transform_indices = @transform_2, window_bounds = array<i64: 32, 128>}, {transform_indices = @transform_3, window_bounds = array<i64: 32, 128>}]} {
    %c0 = arith.constant 0 : index
    %c0_0 = arith.constant 0 : index
    %0 = vector.load %arg1[%c0, %c0_0] : memref<32x32xbf16, #tpu.memory_space<vmem>>, vector<32x32xbf16>
    %c0_1 = arith.constant 0 : index
    %c0_2 = arith.constant 0 : index
    %1 = vector.load %arg3[%c0_1, %c0_2] : memref<32x128xbf16, #tpu.memory_space<vmem>>, vector<32x128xbf16>
    %cst = arith.constant dense<0.000000e+00> : vector<32x128xf32>
    %2 = tpu.matmul %0, %1, %cst {dimension_numbers = #tpu.dot_dimension_numbers<[1], [0], [0], [1], [0, 0, 1, 1], [], []>} : vector<32x32xbf16>, vector<32x128xbf16>, vector<32x128xf32> -> vector<32x128xf32>
    %c0_3 = arith.constant 0 : index
    %c0_4 = arith.constant 0 : index
    %3 = vector.load %arg2[%c0_3, %c0_4] : memref<32x1xf32, #tpu.memory_space<vmem>>, vector<32x1xf32>
    %4 = vector.broadcast %3 : vector<32x1xf32> to vector<32x128xf32>
    %5 = arith.addf %2, %4 : vector<32x128xf32>
    %cst_5 = arith.constant 0.000000e+00 : f32
    %cst_6 = arith.constant 6.000000e+00 : f32
    %6 = vector.broadcast %cst_5 : f32 to vector<32x128xf32>
    %7 = arith.maximumf %6, %5 : vector<32x128xf32>
    %8 = vector.broadcast %cst_6 : f32 to vector<32x128xf32>
    %9 = arith.minimumf %8, %7 : vector<32x128xf32>
    %10 = arith.truncf %9 : vector<32x128xf32> to vector<32x128xbf16>
    %c0_7 = arith.constant 0 : index
    %c0_8 = arith.constant 0 : index
    %11 = vector.load %arg4[%c0_7, %c0_8] : memref<32x128xbf16, #tpu.memory_space<vmem>>, vector<32x128xbf16>
    tpu.vector_store %arg4[%c0_7, %c0_8], %10 {strides = array<i32>} : memref<32x128xbf16, #tpu.memory_space<vmem>>, vector<32x128xbf16>,
    return
  }
  func.func @transform_0(%arg0: i32) -> (i32, i32) {
    %c0_i32 = arith.constant 0 : i32
    %c0_i32_0 = arith.constant 0 : i32
    %c0_i32_1 = arith.constant 0 : i32
    return %c0_i32, %c0_i32_0 : i32, i32
  }
  func.func @transform_1(%arg0: i32) -> (i32, i32) {
    %c0_i32 = arith.constant 0 : i32
    %c0_i32_0 = arith.constant 0 : i32
    %c0_i32_1 = arith.constant 0 : i32
    return %c0_i32, %c0_i32_0 : i32, i32
  }
  func.func @transform_2(%arg0: i32) -> (i32, i32) {
    %c0_i32 = arith.constant 0 : i32
    %c0_i32_0 = arith.constant 0 : i32
    return %c0_i32, %arg0 : i32, i32
  }
  func.func @transform_3(%arg0: i32) -> (i32, i32) {
    %c0_i32 = arith.constant 0 : i32
    %c0_i32_0 = arith.constant 0 : i32
    return %c0_i32, %arg0 : i32, i32
  }
}

</mosaic_0001>

<llo_original>
// kernel: first_block_forward.2
$region0: #{first_block_forward.2}
  #allocation0 [shape = 'u32[]', space=smem, size = 0x4, offset = 0x4, fixed_abs, tag = 'smem constant byte address 0x4 - core index']
  #allocation1 [shape = 'u32[144,128]{1,0:T(1,128)}', space=vmem, size = 0x12000, scoped, tag = 'internal scratch']
  %s0 = inlined_call_operand.vmem [shape: bf16[32,128], index: 0, kind: input, shape index: {}]
  %s1 = inlined_call_operand.vmem [shape: f32[1,32,32], index: 1, kind: output, shape index: {}]
  %s2 = sld [smem:[#allocation0]]
  $region14: #{first_block_forward.2} parent=0
    _
  %s4 = ssub.s32 1, %s2
  %s5 = scalar_select 0, %s4, %s2
  // Predicated region
  $region2: #{first_block_forward.2} parent=0 // pred_check
    _
  $region3: #{first_block_forward.2} parent=0 // pred_check_branch
    %7 = sbr.rel (0) target = $region5
  $region4: #{first_block_forward.2} parent=0 // pred_region
    _
  $region5: #{first_block_forward.2} parent=0 // pred_fallthru
    _
  %v9 = vld [vmem:[%s0] sm:$0xf]
  %v10 = vld [vmem:[%s0 + $0x4] sm:$0xf]
  %v11 = vld [vmem:[%s0 + $0x8] sm:$0xf]
  %v12 = vld [vmem:[%s0 + $0xc] sm:$0xf]
  %v17 = vunpack.c.l.b16 %v9
  %v18 = vunpack.c.l.b16 %v10
  %v19 = vunpack.c.l.b16 %v11
  %v20 = vunpack.c.l.b16 %v12
  %v21 = vpack.c.b16 %v18, %v17
  %v22 = vpack.c.b16 %v20, %v19
  %25 = vmatprep.subr.bf16.mxu0 0
  %26 = vmatpush1.bf16.xpose.msra.mxu0 %v21
  %27 = vmatprep.subr.bf16.mxu0 0
  %28 = vmatpush1.bf16.xpose.msra.mxu0 %v22
  %29 = vmatprep.subr.bf16.mxu0 0
  %30 = vmatpush1.bf16.xpose.msra.mxu0 0
  %31 = vmatprep.subr.bf16.mxu0 0
  %32 = vmatpush1.bf16.xpose.msra.mxu0 0
  %33 = vmatprep.subr.bf16.mxu0 0
  %34 = vmatpush1.bf16.xpose.msra.mxu0 0
  %35 = vmatprep.subr.bf16.mxu0 0
  %36 = vmatpush1.bf16.xpose.msra.mxu0 0
  %37 = vmatprep.subr.bf16.mxu0 0
  %38 = vmatpush1.bf16.xpose.msra.mxu0 0
  %39 = vmatprep.subr.bf16.mxu0 0
  %40 = vmatpush1.bf16.xpose.msra.mxu0 0
  %41 = vmatprep.subr.bf16.mxu0 0
  %42 = vmatpush1.bf16.xpose.msra.mxu0 0
  %43 = vmatprep.subr.bf16.mxu0 0
  %44 = vmatpush1.bf16.xpose.msra.mxu0 0
  %45 = vmatprep.subr.bf16.mxu0 0
  %46 = vmatpush1.bf16.xpose.msra.mxu0 0
  %47 = vmatprep.subr.bf16.mxu0 0
  %48 = vmatpush1.bf16.xpose.msra.mxu0 0
  %49 = vmatprep.subr.bf16.mxu0 0
  %50 = vmatpush1.bf16.xpose.msra.mxu0 0
  %51 = vmatprep.subr.bf16.mxu0 0
  %52 = vmatpush1.bf16.xpose.msra.mxu0 0
  %53 = vmatprep.subr.bf16.mxu0 0
  %54 = vmatpush1.bf16.xpose.msra.mxu0 0
  %55 = vmatprep.subr.bf16.mxu0 0
  %56 = vmatpush1.bf16.xpose.msra.mxu0 0
  %57 = vmatprep.mubr.bf16.mxu0 0
  %58 = vmatmul.mubr.bf16.gmra.mrb[0].mxu0 %v21
  %v59 = vpop.f32.mrb[0].mxu0
  %v60 = vadd.f32 0.0, %v59
  %v61 = vpop.f32.mrb[0].mxu0
  %v62 = vpop.f32.mrb[0].mxu0
  %v63 = vadd.f32 0.0, %v62
  %v64 = vpop.f32.mrb[0].mxu0
  %65 = vmatprep.mubr.bf16.mxu0 0
  %66 = vmatmul.mubr.bf16.gmra.mrb[0].mxu0 %v22
  %v67 = vpop.f32.mrb[0].mxu0
  %v68 = vadd.f32 0.0, %v67
  %v69 = vpop.f32.mrb[0].mxu0
  %v70 = vpop.f32.mrb[0].mxu0
  %v71 = vadd.f32 0.0, %v70
  %v72 = vpop.f32.mrb[0].mxu0
  %73 = vdwg.mxu0
  %vm74 = vcmask 261120
  %75 = vst.msk [vmem:[%s1] sm:$0xff] %vm74, %v60
  %76 = vst.msk [vmem:[%s1 + $0x8] sm:$0xff] %vm74, %v63
  %77 = vst.msk [vmem:[%s1 + $0x10] sm:$0xff] %vm74, %v68
  %78 = vst.msk [vmem:[%s1 + $0x18] sm:$0xff] %vm74, %v71
  // Predicated region
  $region6: #{first_block_forward.2} parent=0 // pred_check
    _
  $region7: #{first_block_forward.2} parent=0 // pred_check_branch
    %80 = sbr.rel (0) target = $region9
  $region8: #{first_block_forward.2} parent=0 // pred_region
    _
  $region9: #{first_block_forward.2} parent=0 // pred_fallthru
    _
  // Predicated region
  $region10: #{first_block_forward.2} parent=0 // pred_check
    _
  $region11: #{first_block_forward.2} parent=0 // pred_check_branch
    %82 = sbr.rel (0) target = $region13
  $region12: #{first_block_forward.2} parent=0 // pred_region
    _
  $region13: #{first_block_forward.2} parent=0 // pred_fallthru
    _

// kernel: first_block_forward.3
$region0: #{first_block_forward.3}
  #allocation0 [shape = 'u32[]', space=smem, size = 0x4, offset = 0x4, fixed_abs, tag = 'smem constant byte address 0x4 - core index']
  #allocation1 [shape = 'u32[144,128]{1,0:T(1,128)}', space=vmem, size = 0x12000, scoped, tag = 'internal scratch']
  %s0 = inlined_call_operand.vmem [shape: bf16[32,32], index: 0, kind: input, shape index: {}]
  %s1 = inlined_call_operand.vmem [shape: f32[32,1], index: 1, kind: input, shape index: {}]
  %s2 = inlined_call_operand.vmem [shape: bf16[32,128], index: 2, kind: input, shape index: {}]
  %s3 = inlined_call_operand.vmem [shape: bf16[32,128], index: 3, kind: output, shape index: {}]
  %s4 = sld [smem:[#allocation0]]
  $region22: #{first_block_forward.3} parent=0
    _
  %s6 = ssub.s32 1, %s4
  %s7 = scalar_select 0, %s6, %s4
  // Predicated region
  $region2: #{first_block_forward.3} parent=0 // pred_check
    _
  $region3: #{first_block_forward.3} parent=0 // pred_check_branch
    %9 = sbr.rel (0) target = $region5
  $region4: #{first_block_forward.3} parent=0 // pred_region
    _
  $region5: #{first_block_forward.3} parent=0 // pred_fallthru
    _
  // Predicated region
  $region6: #{first_block_forward.3} parent=0 // pred_check
    _
  $region7: #{first_block_forward.3} parent=0 // pred_check_branch
    %11 = sbr.rel (0) target = $region9
  $region8: #{first_block_forward.3} parent=0 // pred_region
    _
  $region9: #{first_block_forward.3} parent=0 // pred_fallthru
    _
  // Predicated region
  $region10: #{first_block_forward.3} parent=0 // pred_check
    _
  $region11: #{first_block_forward.3} parent=0 // pred_check_branch
    %13 = sbr.rel (0) target = $region13
  $region12: #{first_block_forward.3} parent=0 // pred_region
    _
  $region13: #{first_block_forward.3} parent=0 // pred_fallthru
    _
  %v15 = vld [vmem:[%s0] sm:$0xf]
  %v16 = vld [vmem:[%s0 + $0x4] sm:$0xf]
  %v17 = vld [vmem:[%s0 + $0x8] sm:$0xf]
  %v18 = vld [vmem:[%s0 + $0xc] sm:$0xf]
  %v19 = vld [vmem:[%s2] sm:$0xf]
  %v20 = vld [vmem:[%s2 + $0x4] sm:$0xf]
  %v21 = vld [vmem:[%s2 + $0x8] sm:$0xf]
  %v22 = vld [vmem:[%s2 + $0xc] sm:$0xf]
  %v23 = vld [vmem:[%s1] sm:$0xff]
  %v24 = vld [vmem:[%s1 + $0x8] sm:$0xff]
  %v25 = vld [vmem:[%s1 + $0x10] sm:$0xff]
  %v26 = vld [vmem:[%s1 + $0x18] sm:$0xff]
  %28 = vset.pattern.permute.xlu0 0
  %29 = vperm.xlu0 %28, %v23
  %v30 = vpop.permute.xlu0 %29
  %33 = vset.pattern.permute.xlu0 0
  %34 = vperm.xlu0 %33, %v24
  %v35 = vpop.permute.xlu0 %34
  %38 = vset.pattern.permute.xlu0 0
  %39 = vperm.xlu0 %38, %v25
  %v40 = vpop.permute.xlu0 %39
  %43 = vset.pattern.permute.xlu0 0
  %44 = vperm.xlu0 %43, %v26
  %v45 = vpop.permute.xlu0 %44
  %v51 = vunpack.c.l.b16 %v15
  %v52 = vunpack.c.l.b16 %v16
  %v53 = vunpack.c.l.b16 %v17
  %v54 = vunpack.c.l.b16 %v18
  %v55 = vpack.c.b16 %v52, %v51
  %v56 = vpack.c.b16 %v54, %v53
  %v61 = vunpack.c.l.b16 %v19
  %v62 = vunpack.c.l.b16 %v20
  %v63 = vunpack.c.l.b16 %v21
  %v64 = vunpack.c.l.b16 %v22
  %v65 = vpack.c.b16 %v62, %v61
  %v66 = vpack.c.b16 %v64, %v63
  %vm69 = vcmask 261120
  %v71 = vsel %vm69, %v55, 0
  %v74 = vsel %vm69, %v56, 0
  %76 = vmatprep.subr.bf16.mxu0 0
  %77 = vmatpush1.bf16.msra.mxu0 %v65
  %78 = vmatprep.subr.bf16.mxu0 0
  %79 = vmatpush1.bf16.msra.mxu0 %v66
  %80 = vmatprep.subr.bf16.mxu0 0
  %81 = vmatpush1.bf16.msra.mxu0 0
  %82 = vmatprep.subr.bf16.mxu0 0
  %83 = vmatpush1.bf16.msra.mxu0 0
  %84 = vmatprep.subr.bf16.mxu0 0
  %85 = vmatpush1.bf16.msra.mxu0 0
  %86 = vmatprep.subr.bf16.mxu0 0
  %87 = vmatpush1.bf16.msra.mxu0 0
  %88 = vmatprep.subr.bf16.mxu0 0
  %89 = vmatpush1.bf16.msra.mxu0 0
  %90 = vmatprep.subr.bf16.mxu0 0
  %91 = vmatpush1.bf16.msra.mxu0 0
  %92 = vmatprep.subr.bf16.mxu0 0
  %93 = vmatpush1.bf16.msra.mxu0 0
  %94 = vmatprep.subr.bf16.mxu0 0
  %95 = vmatpush1.bf16.msra.mxu0 0
  %96 = vmatprep.subr.bf16.mxu0 0
  %97 = vmatpush1.bf16.msra.mxu0 0
  %98 = vmatprep.subr.bf16.mxu0 0
  %99 = vmatpush1.bf16.msra.mxu0 0
  %100 = vmatprep.subr.bf16.mxu0 0
  %101 = vmatpush1.bf16.msra.mxu0 0
  %102 = vmatprep.subr.bf16.mxu0 0
  %103 = vmatpush1.bf16.msra.mxu0 0
  %104 = vmatprep.subr.bf16.mxu0 0
  %105 = vmatpush1.bf16.msra.mxu0 0
  %106 = vmatprep.subr.bf16.mxu0 0
  %107 = vmatpush1.bf16.msra.mxu0 0
  %108 = vmatprep.mubr.bf16.mxu0 0
  %109 = vmatmul.mubr.bf16.gmra.mrb[0].mxu0 %v71
  %v110 = vpop.f32.mrb[0].mxu0
  %v111 = vadd.f32 %v30, %v110
  %v112 = vpop.f32.mrb[0].mxu0
  %v113 = vpop.f32.mrb[0].mxu0
  %v114 = vadd.f32 %v35, %v113
  %v115 = vpop.f32.mrb[0].mxu0
  %116 = vmatprep.mubr.bf16.mxu0 0
  %117 = vmatmul.mubr.bf16.gmra.mrb[0].mxu0 %v74
  %v118 = vpop.f32.mrb[0].mxu0
  %v119 = vadd.f32 %v40, %v118
  %v120 = vpop.f32.mrb[0].mxu0
  %v121 = vpop.f32.mrb[0].mxu0
  %v122 = vadd.f32 %v45, %v121
  %v123 = vpop.f32.mrb[0].mxu0
  %124 = vdwg.mxu0
  %v125 = vmax.f32 %v111, 0.0
  %v126 = vmax.f32 %v114, 0.0
  %v127 = vmax.f32 %v119, 0.0
  %v128 = vmax.f32 %v122, 0.0
  %v129 = vmin.f32 %v125, 6.0
  %v130 = vmin.f32 %v126, 6.0
  %v131 = vmin.f32 %v127, 6.0
  %v132 = vmin.f32 %v128, 6.0
  %v133 = vpack.c.bf16 %v130, %v129
  %v134 = vpack.c.bf16 %v132, %v131
  %v137 = vunpack.c.l.b16 %v133
  %v138 = vunpack.c.h.b16 %v133
  %v139 = vunpack.c.l.b16 %v134
  %v140 = vunpack.c.h.b16 %v134
  %v141 = vpack.c.b16 %v137, %v137
  %v142 = vpack.c.b16 %v138, %v138
  %v143 = vpack.c.b16 %v139, %v139
  %v144 = vpack.c.b16 %v140, %v140
  %149 = vst [vmem:[%s3] sm:$0xf] %v141
  %150 = vst [vmem:[%s3 + $0x4] sm:$0xf] %v142
  %151 = vst [vmem:[%s3 + $0x8] sm:$0xf] %v143
  %152 = vst [vmem:[%s3 + $0xc] sm:$0xf] %v144
  // Predicated region
  $region14: #{first_block_forward.3} parent=0 // pred_check
    _
  $region15: #{first_block_forward.3} parent=0 // pred_check_branch
    %154 = sbr.rel (0) target = $region17
  $region16: #{first_block_forward.3} parent=0 // pred_region
    _
  $region17: #{first_block_forward.3} parent=0 // pred_fallthru
    _
  // Predicated region
  $region18: #{first_block_forward.3} parent=0 // pred_check
    _
  $region19: #{first_block_forward.3} parent=0 // pred_check_branch
    %156 = sbr.rel (0) target = $region21
  $region20: #{first_block_forward.3} parent=0 // pred_region
    _
  $region21: #{first_block_forward.3} parent=0 // pred_fallthru
    _

</llo_original>
